<compile_context>
chip_gen: v7x
topology: tpu7x:2x2x1
jax: 0.10.0
libtpu: 0.0.40
codegen_flags: <defaults>
</compile_context>

<pallas_src>
import jax
import jax.numpy as jnp
from jax.experimental import pallas as pl
from jax.experimental.pallas import tpu as pltpu


_DEFAULT_CONFIG = {
    'type': 'bce_with_logits',
    'pos_weight': 1.0,
    'label_smoothing': 0.0,
    'focal_alpha': 0.25,
    'focal_gamma': 2.0,
    'dice_smooth': 1e-06,
    'combination_weights': {'bce': 0.7, 'focal': 0.3},
}

_LANE = 128
_SUB = 8


def _ipow(x, g):
    """Exact small-integer-exponent power via repeated multiply (avoids EUP pow)."""
    gi = int(g)
    if float(g) == gi and 0 <= gi <= 8:
        r = jnp.ones_like(x)
        for _ in range(gi):
            r = r * x
        return r
    return jnp.power(x, g)


def _components_for(loss_type, comb_weights):
    """Which partial sums the kernel must accumulate for this loss type."""
    if loss_type == 'bce_with_logits':
        return ('bce',)
    if loss_type == 'focal':
        return ('focal',)
    if loss_type == 'asymmetric':
        return ('asym',)
    if loss_type == 'dice':
        return ('inter', 'prob', 'targ')
    if loss_type == 'combined':
        comps = []
        if ('bce' in comb_weights) or ('focal' in comb_weights):
            comps.append('bce_focal')        # weights folded in-kernel
        if 'dice' in comb_weights:
            comps.extend(['inter', 'prob', 'targ'])
        return tuple(comps)
    # TODO(synk): 'bce' needs a data-dependent min/max branch deciding whether
    # to apply sigmoid, and 'weighted_bce' needs a dynamic pos_weight derived
    # from target statistics (two-pass); not implemented in this single-pass
    # kernel.
    raise ValueError(f'Unsupported loss type: {loss_type}')


def _make_kernel(loss_type, comps, block_rows, steps_per_split, needs_mask,
                 n_full_blocks, remainder, pos_weight, label_smoothing,
                 focal_alpha, focal_gamma, comb_weights):
    """Build the Pallas kernel body with all config baked in statically."""
    combined = (loss_type == 'combined')
    need_bce = ('bce' in comps) or (combined and 'bce' in comb_weights)
    need_focal = ('focal' in comps) or (combined and 'focal' in comb_weights)
    need_asym = 'asym' in comps
    need_dice = 'inter' in comps
    need_sigmoid = need_focal or need_asym or need_dice
    block_elems = block_rows * _LANE

    def kernel(pred_ref, targ_ref, out_ref):
        c = pl.program_id(0)   # megacore split axis ("parallel")
        i = pl.program_id(1)   # streaming reduction axis ("arbitrary")

        @pl.when(i == 0)
        def _init():
            out_ref[...] = jnp.zeros_like(out_ref)

        x = pred_ref[...].astype(jnp.float32)
        t = targ_ref[...].astype(jnp.float32)
        if label_smoothing > 0.0:
            t = t * (1.0 - label_smoothing) + 0.5 * label_smoothing

        # ---- per-element loss values (computed once; shared by both the
        # ---- masked and unmasked accumulate branches) ----
        vals = {}
        bce = focal = None
        if need_bce:
            # Numerically stable BCEWithLogits with scalar pos_weight:
            #   softplus(-x) = log1p(exp(-|x|)) + max(-x, 0)
            #   loss = (1 - t) * x + (1 + (w - 1) * t) * softplus(-x)
            softplus_negx = jnp.log1p(jnp.exp(-jnp.abs(x))) + jnp.maximum(-x, 0.0)
            log_w = 1.0 + (pos_weight - 1.0) * t
            bce = (1.0 - t) * x + log_w * softplus_negx
        if need_sigmoid:
            # One EUP op (tanh) instead of exp + reciprocal.
            p = 0.5 * jnp.tanh(0.5 * x) + 0.5
        if need_focal or need_asym:
            # Keep the +1e-8 epsilon formulation for parity with PyTorch.
            logp = jnp.log(p + 1e-8)
            log1mp = jnp.log(1.0 - p + 1e-8)
        if need_focal:
            focal = (
                -focal_alpha * _ipow(1.0 - p, focal_gamma) * t * logp
                - (1.0 - focal_alpha) * _ipow(p, focal_gamma) * (1.0 - t) * log1mp)

        if 'bce' in comps:
            vals['bce'] = bce
        if 'focal' in comps:
            vals['focal'] = focal
        if 'asym' in comps:
            # gamma_pos = 1, gamma_neg = 4.
            vals['asym'] = (-t * (1.0 - p) * logp
                            - (1.0 - t) * _ipow(p, 4.0) * log1mp)
        if 'bce_focal' in comps:
            v = None
            if need_bce:
                v = comb_weights['bce'] * bce
            if need_focal:
                fv = comb_weights['focal'] * focal
                v = fv if v is None else v + fv
            vals['bce_focal'] = v
        if need_dice:
            vals['inter'] = p * t
            vals['prob'] = p
            vals['targ'] = t

        def vsum(v):
            # (block_rows, 128) -> (8, 128) using only vreg-wise adds; the
            # cross-lane reduction is deferred to the wrapper.
            return jnp.sum(v.reshape(block_rows // _SUB, _SUB, _LANE), axis=0)

        def accumulate(valid):
            for j, name in enumerate(comps):
                v = vals[name]
                if valid is not None:
                    # jnp.where (not multiply) so garbage in the Pallas-padded
                    # tail of a partial block (possibly NaN/Inf) cannot leak.
                    v = jnp.where(valid, v, 0.0)
                out_ref[0, j] += vsum(v)

        if needs_mask:
            blk = c * steps_per_split + i
            # Full blocks: plain unmasked accumulate (no iota/compare/select).
            @pl.when(blk < n_full_blocks)
            def _full_block():
                accumulate(None)

            # Partial trailing block(s): block-local index vs static remainder
            # (values stay tiny -> no int32 overflow even for huge tensors).
            @pl.when(blk >= n_full_blocks)
            def _partial_block():
                row = jax.lax.broadcasted_iota(jnp.int32, (block_rows, _LANE), 0)
                lane = jax.lax.broadcasted_iota(jnp.int32, (block_rows, _LANE), 1)
                local = row * _LANE + lane
                off = (blk - n_full_blocks) * block_elems
                accumulate((off + local) < remainder)
        else:
            accumulate(None)

    return kernel


def deepfake_loss(predictions, targets, config=None):
    """Pallas TPU implementation of DeepfakeLoss.forward."""
    cfg = dict(_DEFAULT_CONFIG)
    if config:
        cfg.update(config)

    loss_type = cfg.get('type', 'bce_with_logits')
    pos_weight = float(cfg.get('pos_weight', 1.0))
    label_smoothing = float(cfg.get('label_smoothing', 0.0))
    focal_alpha = float(cfg.get('focal_alpha', 0.25))
    focal_gamma = float(cfg.get('focal_gamma', 2.0))
    dice_smooth = float(cfg.get('dice_smooth', 1e-06))
    comb_weights = {k: float(v) for k, v in
                    dict(cfg.get('combination_weights',
                                 {'bce': 0.7, 'focal': 0.3})).items()}

    comps = _components_for(loss_type, comb_weights)
    if not comps:  # 'combined' with empty weights -> PyTorch returns 0.0
        return jnp.float32(0.0)

    n = int(predictions.size)
    if n == 0:
        # Guard the 1/n finalize division (PyTorch would return NaN here).
        raise ValueError('DeepfakeLoss: empty predictions tensor')

    # Stream inputs in their original dtype; the kernel casts to f32 on load.
    flat_p = predictions.reshape(-1)
    flat_t = targets.reshape(-1)

    # View as (rows, 128); pad (a copy) only when the flat size is not already
    # a multiple of 128 or has fewer than 8 rows.
    rows = max(-(-n // _LANE), _SUB)
    pad = rows * _LANE - n
    if pad > 0:
        flat_p = jnp.pad(flat_p, (0, pad))
        flat_t = jnp.pad(flat_t, (0, pad))
    P = flat_p.reshape(rows, _LANE)
    T = flat_t.reshape(rows, _LANE)

    # Dtype-aware block size: ~2 MiB of input per tensor per block.
    # Transcendental-heavy paths keep 4096 rows so full-block f32 temporaries
    # stay well within v7x's smaller (64 MiB physical / 32 MiB scoped) VMEM.
    itemsize = max(jnp.dtype(predictions.dtype).itemsize,
                   jnp.dtype(targets.dtype).itemsize)
    transcendental = (loss_type in ('focal', 'asymmetric', 'dice')
                      or (loss_type == 'combined'
                          and ('focal' in comb_weights or 'dice' in comb_weights)))
    max_block_rows = 8192 if (itemsize <= 2 and not transcendental) else 4096
    block_rows = max(min(max_block_rows, (rows // _SUB) * _SUB), _SUB)

    num_blocks = -(-rows // block_rows)
    block_elems = block_rows * _LANE
    # Masking is needed only if the grid covers indices >= n (lane padding or a
    # partial final Pallas block); all other blocks take the unmasked path.
    needs_mask = num_blocks * block_elems > n
    n_full_blocks = n // block_elems
    remainder = n - n_full_blocks * block_elems

    # Two-way split across TensorCores (v7x megacore) when the block count is
    # even; on single-TC chips this is just a serial outer loop of size 2.
    num_splits = 2 if (num_blocks >= 2 and num_blocks % 2 == 0) else 1
    steps_per_split = num_blocks // num_splits
    n_comps = len(comps)

    kernel = _make_kernel(loss_type, comps, block_rows, steps_per_split,
                          needs_mask, n_full_blocks, remainder, pos_weight,
                          label_smoothing, focal_alpha, focal_gamma,
                          comb_weights)

    tile_spec = pl.BlockSpec((block_rows, _LANE),
                             lambda c, i: (c * steps_per_split + i, 0))
    partials = pl.pallas_call(
        kernel,
        out_shape=jax.ShapeDtypeStruct((num_splits, n_comps, _SUB, _LANE),
                                       jnp.float32),
        grid_spec=pltpu.PrefetchScalarGridSpec(
            num_scalar_prefetch=0,
            grid=(num_splits, steps_per_split),
            in_specs=[tile_spec, tile_spec],
            out_specs=pl.BlockSpec((1, n_comps, _SUB, _LANE),
                                   lambda c, i: (c, 0, 0, 0)),
        ),
        compiler_params=pltpu.CompilerParams(
            dimension_semantics=("parallel", "arbitrary"),
            vmem_limit_bytes=48 * 1024 * 1024),
    )(P, T)

    # Tiny final combine in the wrapper (per-core, per-component partial sums).
    sums = jnp.sum(partials, axis=(0, 2, 3))   # (n_comps,)
    idx = {name: k for k, name in enumerate(comps)}
    inv_n = jnp.float32(1.0 / float(n))

    def dice_from_sums():
        inter = sums[idx['inter']]
        pr = sums[idx['prob']]
        tg = sums[idx['targ']]
        return 1.0 - (2.0 * inter + dice_smooth) / (pr + tg + dice_smooth)

    if loss_type in ('bce_with_logits', 'focal', 'asymmetric'):
        loss = sums[0] * inv_n
    elif loss_type == 'dice':
        loss = dice_from_sums()
    else:  # 'combined'
        loss = jnp.float32(0.0)
        if 'bce_focal' in idx:
            loss = loss + sums[idx['bce_focal']] * inv_n   # weights pre-folded
        if 'inter' in idx:
            loss = loss + comb_weights['dice'] * dice_from_sums()
    return loss


# ---------------- pure-JAX references for verification ----------------

def _ref_bce_with_logits(x, t, w=1.0):
    x = x.astype(jnp.float32).reshape(-1)
    t = t.astype(jnp.float32).reshape(-1)
    log_w = 1.0 + (w - 1.0) * t
    loss = (1.0 - t) * x + log_w * (jnp.log1p(jnp.exp(-jnp.abs(x)))
                                    + jnp.maximum(-x, 0.0))
    return jnp.mean(loss)


def _ref_focal(x, t, alpha=0.25, gamma=2.0, smoothing=0.0):
    x = x.astype(jnp.float32).reshape(-1)
    t = t.astype(jnp.float32).reshape(-1)
    t = t * (1.0 - smoothing) + 0.5 * smoothing
    p = jax.nn.sigmoid(x)
    pos = -alpha * (1.0 - p) ** gamma * t * jnp.log(p + 1e-8)
    neg = -(1.0 - alpha) * p ** gamma * (1.0 - t) * jnp.log(1.0 - p + 1e-8)
    return jnp.mean(pos + neg)


def _ref_asym(x, t):
    x = x.astype(jnp.float32).reshape(-1)
    t = t.astype(jnp.float32).reshape(-1)
    p = jax.nn.sigmoid(x)
    return jnp.mean(-t * (1.0 - p) * jnp.log(p + 1e-8)
                    - (1.0 - t) * p ** 4 * jnp.log(1.0 - p + 1e-8))


def _ref_dice(x, t, smooth=1e-06):
    x = x.astype(jnp.float32).reshape(-1)
    t = t.astype(jnp.float32).reshape(-1)
    p = jax.nn.sigmoid(x)
    inter = jnp.sum(p * t)
    return 1.0 - (2.0 * inter + smooth) / (jnp.sum(p) + jnp.sum(t) + smooth)


if __name__ == "__main__":
    key = jax.random.PRNGKey(0)
    ks = jax.random.split(key, 8)
    checks = []

    # Deepfake-classifier style: per-pixel logits on a small NCHW map.
    p0 = jax.random.normal(ks[0], (2, 4, 16, 16), jnp.float32) * 2.0
    t0 = jax.random.bernoulli(ks[1], 0.5, (2, 4, 16, 16)).astype(jnp.float32)

    # Default config: bce_with_logits.
    out = jax.block_until_ready(deepfake_loss(p0, t0))
    checks.append((float(out), float(_ref_bce_with_logits(p0, t0)), 1e-4))

    # Combined: 0.7 * bce + 0.3 * focal (single folded accumulator).
    out = jax.block_until_ready(deepfake_loss(p0, t0, config={'type': 'combined'}))
    ref = 0.7 * _ref_bce_with_logits(p0, t0) + 0.3 * _ref_focal(p0, t0)
    checks.append((float(out), float(ref), 1e-4))

    # Dice.
    out = jax.block_until_ready(deepfake_loss(p0, t0, config={'type': 'dice'}))
    checks.append((float(out), float(_ref_dice(p0, t0)), 1e-4))

    # Asymmetric.
    out = jax.block_until_ready(deepfake_loss(p0, t0, config={'type': 'asymmetric'}))
    checks.append((float(out), float(_ref_asym(p0, t0)), 1e-4))

    # Ragged size + label smoothing: exercises the 2-way split with a masked
    # partial final block.
    p1 = jax.random.normal(ks[2], (2, 4, 16, 20), jnp.float32) * 2.0
    t1 = jax.random.bernoulli(ks[3], 0.5, (2, 4, 16, 20)).astype(jnp.float32)
    out = jax.block_until_ready(
        deepfake_loss(p1, t1, config={'type': 'focal', 'label_smoothing': 0.1}))
    checks.append((float(out), float(_ref_focal(p1, t1, smoothing=0.1)), 1e-4))

    # bf16 streaming (inputs stay bf16 in HBM, cast to f32 in-kernel).
    p2 = (jax.random.normal(ks[4], (2, 4, 32, 32), jnp.float32) * 2.0).astype(jnp.bfloat16)
    t2 = jax.random.bernoulli(ks[5], 0.5, (2, 4, 32, 32)).astype(jnp.bfloat16)
    out = jax.block_until_ready(deepfake_loss(p2, t2))
    checks.append((float(out), float(_ref_bce_with_logits(p2, t2)), 1e-3))

    # Larger input: exercises the even-block 2-way ("megacore") split with the
    # unmasked fast path on every block.
    p3 = jax.random.normal(ks[6], (1024, 1024), jnp.float32)
    t3 = jax.random.bernoulli(ks[7], 0.5, (1024, 1024)).astype(jnp.float32)
    out = jax.block_until_ready(deepfake_loss(p3, t3))
    checks.append((float(out), float(_ref_bce_with_logits(p3, t3)), 1e-3))

    ok = all(abs(a - b) <= tol for a, b, tol in checks)
    if ok:
        print("KERNEL_OK")
    else:
        print("MISMATCH", checks)
</pallas_src>

<mosaic_0001>
module attributes {stable_mosaic.version = 11 : i64} {
  func.func @kernel(%arg0: i32, %arg1: i32, %arg2: memref<16x128xf32, #tpu.memory_space<vmem>>, %arg3: memref<16x128xf32, #tpu.memory_space<vmem>>, %arg4: memref<1x1x8x128xf32, #tpu.memory_space<vmem>>) attributes {dimension_semantics = [#tpu.dimension_semantics<parallel>, #tpu.dimension_semantics<arbitrary>], iteration_bounds = array<i64: 1, 1>, scalar_prefetch = 0 : i64, scratch_operands = 0 : i64, tpu.core_type = #tpu.core_type<tc>, window_params = [{transform_indices = @transform_0, window_bounds = array<i64: 16, 128>}, {transform_indices = @transform_1, window_bounds = array<i64: 16, 128>}, {transform_indices = @transform_2, window_bounds = array<i64: 1, 1, 8, 128>}]} {
    %c0_i32 = arith.constant 0 : i32
    %0 = arith.cmpi eq, %arg1, %c0_i32 : i32
    %1 = arith.extui %0 : i1 to i32
    %c0_i32_0 = arith.constant 0 : i32
    %2 = arith.cmpi ne, %1, %c0_i32_0 : i32
    scf.if %2 {
      %cst_18 = arith.constant 0.000000e+00 : f32
      %32 = vector.broadcast %cst_18 : f32 to vector<1x1x8x128xf32>
      %c0_19 = arith.constant 0 : index
      %c0_20 = arith.constant 0 : index
      %c0_21 = arith.constant 0 : index
      %c0_22 = arith.constant 0 : index
      %33 = vector.load %arg4[%c0_19, %c0_20, %c0_21, %c0_22] : memref<1x1x8x128xf32, #tpu.memory_space<vmem>>, vector<1x1x8x128xf32>
      tpu.vector_store %arg4[%c0_19, %c0_20, %c0_21, %c0_22], %32 {strides = array<i32>} : memref<1x1x8x128xf32, #tpu.memory_space<vmem>>, vector<1x1x8x128xf32>,
    } else {
    }
    %c0 = arith.constant 0 : index
    %c0_1 = arith.constant 0 : index
    %3 = vector.load %arg2[%c0, %c0_1] : memref<16x128xf32, #tpu.memory_space<vmem>>, vector<16x128xf32>
    %c0_2 = arith.constant 0 : index
    %c0_3 = arith.constant 0 : index
    %4 = vector.load %arg3[%c0_2, %c0_3] : memref<16x128xf32, #tpu.memory_space<vmem>>, vector<16x128xf32>
    %5 = math.absf %3 : vector<16x128xf32>
    %cst = arith.constant 0.000000e+00 : f32
    %6 = vector.broadcast %cst : f32 to vector<16x128xf32>
    %7 = arith.subf %6, %5 : vector<16x128xf32>
    %8 = math.exp %7 : vector<16x128xf32>
    %9 = math.log1p %8 : vector<16x128xf32>
    %cst_4 = arith.constant 0.000000e+00 : f32
    %10 = vector.broadcast %cst_4 : f32 to vector<16x128xf32>
    %11 = arith.subf %10, %3 : vector<16x128xf32>
    %cst_5 = arith.constant 0.000000e+00 : f32
    %12 = vector.broadcast %cst_5 : f32 to vector<16x128xf32>
    %13 = arith.maximumf %11, %12 : vector<16x128xf32>
    %14 = arith.addf %9, %13 : vector<16x128xf32>
    %cst_6 = arith.constant 0.000000e+00 : f32
    %15 = vector.broadcast %cst_6 : f32 to vector<16x128xf32>
    %16 = arith.mulf %15, %4 : vector<16x128xf32>
    %cst_7 = arith.constant 1.000000e+00 : f32
    %17 = vector.broadcast %cst_7 : f32 to vector<16x128xf32>
    %18 = arith.addf %17, %16 : vector<16x128xf32>
    %cst_8 = arith.constant 1.000000e+00 : f32
    %19 = vector.broadcast %cst_8 : f32 to vector<16x128xf32>
    %20 = arith.subf %19, %4 : vector<16x128xf32>
    %21 = arith.mulf %20, %3 : vector<16x128xf32>
    %22 = arith.mulf %18, %14 : vector<16x128xf32>
    %23 = arith.addf %21, %22 : vector<16x128xf32>
    %c0_9 = arith.constant 0 : index
    %c0_10 = arith.constant 0 : index
    %c0_11 = arith.constant 0 : index
    %c0_12 = arith.constant 0 : index
    %24 = vector.load %arg4[%c0_9, %c0_10, %c0_11, %c0_12] : memref<1x1x8x128xf32, #tpu.memory_space<vmem>>, vector<1x1x8x128xf32>
    %25 = vector.shape_cast %24 : vector<1x1x8x128xf32> to vector<8x128xf32>
    %26 = vector.shape_cast %23 : vector<16x128xf32> to vector<2x8x128xf32>
    %cst_13 = arith.constant dense<0.000000e+00> : vector<8x128xf32>
    %27 = vector.multi_reduction <add>, %26, %cst_13 [0] : vector<2x8x128xf32> to vector<8x128xf32>
    %28 = arith.addf %25, %27 : vector<8x128xf32>
    %c0_14 = arith.constant 0 : index
    %c0_15 = arith.constant 0 : index
    %c0_16 = arith.constant 0 : index
    %c0_17 = arith.constant 0 : index
    %29 = vector.load %arg4[%c0_14, %c0_15, %c0_16, %c0_17] : memref<1x1x8x128xf32, #tpu.memory_space<vmem>>, vector<1x1x8x128xf32>
    %30 = vector.shape_cast %29 : vector<1x1x8x128xf32> to vector<8x128xf32>
    %31 = vector.shape_cast %28 : vector<8x128xf32> to vector<1x1x8x128xf32>
    tpu.vector_store %arg4[%c0_14, %c0_15, %c0_16, %c0_17], %31 {strides = array<i32>} : memref<1x1x8x128xf32, #tpu.memory_space<vmem>>, vector<1x1x8x128xf32>,
    return
  }
  func.func @transform_0(%arg0: i32, %arg1: i32) -> (i32, i32) {
    %c1_i32 = arith.constant 1 : i32
    %0 = arith.muli %arg0, %c1_i32 : i32
    %1 = arith.addi %0, %arg1 : i32
    %c0_i32 = arith.constant 0 : i32
    %c0_i32_0 = arith.constant 0 : i32
    return %1, %c0_i32 : i32, i32
  }
  func.func @transform_1(%arg0: i32, %arg1: i32) -> (i32, i32) {
    %c1_i32 = arith.constant 1 : i32
    %0 = arith.muli %arg0, %c1_i32 : i32
    %1 = arith.addi %0, %arg1 : i32
    %c0_i32 = arith.constant 0 : i32
    %c0_i32_0 = arith.constant 0 : i32
    return %1, %c0_i32 : i32, i32
  }
  func.func @transform_2(%arg0: i32, %arg1: i32) -> (i32, i32, i32, i32) {
    %c0_i32 = arith.constant 0 : i32
    %c0_i32_0 = arith.constant 0 : i32
    %c0_i32_1 = arith.constant 0 : i32
    %c0_i32_2 = arith.constant 0 : i32
    return %arg0, %c0_i32, %c0_i32_0, %c0_i32_1 : i32, i32, i32, i32
  }
}

</mosaic_0001>

<llo_original>
// kernel: tpu_custom_call.1
$region0: #{tpu_custom_call.1}
  #allocation0 [shape = 'u32[]', space=smem, size = 0x4, offset = 0x4, fixed_abs, tag = 'smem constant byte address 0x4 - core index']
  #allocation1 [shape = 'u32[144,128]{1,0:T(1,128)}', space=vmem, size = 0x12000, scoped, tag = 'internal scratch']
  %s0 = inlined_call_operand.hbm [shape: f32[16,128], index: 0, kind: input, shape index: {}]
  %s1 = inlined_call_operand.hbm [shape: f32[16,128], index: 1, kind: input, shape index: {}]
  %s2 = inlined_call_operand.hbm [shape: f32[1,1,8,128], index: 2, kind: output, shape index: {}]
  %s3 = sld [smem:[#allocation0]]
  $region30: #{tpu_custom_call.1} parent=0
    _
  %s5 = ssub.s32 1, %s3
  %s6 = scalar_select 0, %s5, %s3
  $region1: #{tpu_custom_call.1} parent=0
    #allocation2 [shape = 'u8[8192]{0}', space=vmem, size = 0x2000, scoped, tag = 'input window, operand 0, single buffered']
    #allocation3 [shape = 's32[1]{0}', space=sflag, size = 0x4, scoped, tag = 'scoped memory for tpu_custom_call.1']
    #allocation4 [shape = 's32[1]{0}', space=sflag, size = 0x4, scoped, tag = 'scoped memory for tpu_custom_call.1']
    #allocation5 [shape = 'u8[8192]{0}', space=vmem, size = 0x2000, scoped, tag = 'input window, operand 1, single buffered']
    #allocation6 [shape = 's32[1]{0}', space=sflag, size = 0x4, scoped, tag = 'scoped memory for tpu_custom_call.1']
    #allocation7 [shape = 'u8[4096]{0}', space=vmem, size = 0x1000, scoped, tag = 'output window, operand 0, single buffered']
    %7 = vsyncpa [#allocation3], 0
    %8 = vsyncpa [#allocation6], 0
    %9 = vsyncpa [#allocation4], 0
    // Predicated region
    $region2: #{tpu_custom_call.1} parent=1 // pred_check
      _
    $region3: #{tpu_custom_call.1} parent=1 // pred_check_branch
      %11 = sbr.rel (0) target = $region5
    $region4: #{tpu_custom_call.1} parent=1 // pred_region
      %s12 = sadd.s32 0, 0
      %s13 = smul.u32 2, %s12
      %s15 = ssub.s32 256, 256
      %16 = vsyncadd [#allocation3], %s15
      %s17 = smul.addr %s13, 128
      %s18 = scalar_lea.hbm %s0, %s17
      %s19 = sshll.u32 [#allocation2], 4
      %s20 = int_to_ptr.vmem [resolvable:$true] %s19
      %25 = dma.hbm_to_vmem [thread:$0]  %s18, 256, %s20, [#allocation3], 128, 128, 8
    $region5: #{tpu_custom_call.1} parent=1 // pred_fallthru
      _
    // Predicated region
    $region6: #{tpu_custom_call.1} parent=1 // pred_check
      _
    $region7: #{tpu_custom_call.1} parent=1 // pred_check_branch
      %27 = sbr.rel (0) target = $region9
    $region8: #{tpu_custom_call.1} parent=1 // pred_region
      %s28 = sadd.s32 0, 0
      %s29 = smul.u32 2, %s28
      %s31 = ssub.s32 256, 256
      %32 = vsyncadd [#allocation6], %s31
      %s33 = smul.addr %s29, 128
      %s34 = scalar_lea.hbm %s1, %s33
      %s35 = sshll.u32 [#allocation5], 4
      %s36 = int_to_ptr.vmem [resolvable:$true] %s35
      %41 = dma.hbm_to_vmem [thread:$0]  %s34, 256, %s36, [#allocation6], 128, 128, 8
    $region9: #{tpu_custom_call.1} parent=1 // pred_fallthru
      _
    // Predicated region
    $region10: #{tpu_custom_call.1} parent=1 // pred_check
      _
    $region11: #{tpu_custom_call.1} parent=1 // pred_check_branch
      %43 = sbr.rel (0) target = $region13
    $region12: #{tpu_custom_call.1} parent=1 // pred_region
      %44 = dma.done [#allocation3], 256
    $region13: #{tpu_custom_call.1} parent=1 // pred_fallthru
      _
    // Predicated region
    $region14: #{tpu_custom_call.1} parent=1 // pred_check
      _
    $region15: #{tpu_custom_call.1} parent=1 // pred_check_branch
      %46 = sbr.rel (0) target = $region17
    $region16: #{tpu_custom_call.1} parent=1 // pred_region
      %47 = dma.done [#allocation6], 256
    $region17: #{tpu_custom_call.1} parent=1 // pred_fallthru
      _
    %s48 = sadd.s32 0, 0
    %s49 = smul.u32 2, %s48
    %s50 = sadd.s32 0, 0
    %s51 = smul.u32 2, %s50
    %p52 = scmp.eq.s32.totalorder 0, 0
    // Predicated region
    $region18: #{tpu_custom_call.1} parent=1 // pred_check
      %p53 = pneg %p52
    $region19: #{tpu_custom_call.1} parent=1 // pred_check_branch
      %55 = sbr.rel (%p53) target = $region21
    $region20: #{tpu_custom_call.1} parent=1 // pred_region
      %56 = vst [vmem:[#allocation7] sm:$0xff] 0.0
    $region21: #{tpu_custom_call.1} parent=1 // pred_fallthru
      _
    %v57 = vld [vmem:[#allocation2] sm:$0xff]
    %v58 = vld [vmem:[#allocation2 + $0x8] sm:$0xff]
    %v59 = vld [vmem:[#allocation5] sm:$0xff]
    %v60 = vld [vmem:[#allocation5 + $0x8] sm:$0xff]
    %v61 = vand.u32 2147483647, %v57
    %v62 = vand.u32 2147483647, %v58
    %v63 = vsub.f32 0.0, %v61
    %v64 = vsub.f32 0.0, %v62
    %v65 = vmul.f32 %v63, 1.442695
    %v66 = vpow.pop %v65
    %v67 = vmul.f32 %v64, 1.442695
    %v68 = vpow.pop %v67
    %v69 = vadd.f32 %v66, 1.0
    %v70 = vlog2.pop %v69
    %v71 = vmul.f32 %v70, 0.6931472
    %v72 = vmul.f32 -0.5, %v66
    %v73 = vadd.f32 %v72, 1.0
    %v74 = vmul.f32 %v73, %v66
    %v75 = vand.u32 2147483647, %v66
    %vm76 = vcmp.lt.f32.partialorder %v75, 0.0004427343
    %v77 = vsel %vm76, %v74, %v71
    %v78 = vadd.f32 %v68, 1.0
    %v79 = vlog2.pop %v78
    %v80 = vmul.f32 %v79, 0.6931472
    %v81 = vmul.f32 -0.5, %v68
    %v82 = vadd.f32 %v81, 1.0
    %v83 = vmul.f32 %v82, %v68
    %v84 = vand.u32 2147483647, %v68
    %vm85 = vcmp.lt.f32.partialorder %v84, 0.0004427343
    %v86 = vsel %vm85, %v83, %v80
    %v87 = vsub.f32 0.0, %v57
    %v88 = vsub.f32 0.0, %v58
    %v89 = vmax.f32 %v87, 0.0
    %v90 = vmax.f32 %v88, 0.0
    %v91 = vadd.f32 %v77, %v89
    %v92 = vadd.f32 %v86, %v90
    %v93 = vmul.f32 %v59, 0.0
    %v94 = vmul.f32 %v60, 0.0
    %v95 = vadd.f32 %v93, 1.0
    %v96 = vadd.f32 %v94, 1.0
    %v97 = vsub.f32 1.0, %v59
    %v98 = vsub.f32 1.0, %v60
    %v99 = vmul.f32 %v97, %v57
    %v100 = vmul.f32 %v98, %v58
    %v101 = vmul.f32 %v95, %v91
    %v102 = vmul.f32 %v96, %v92
    %v103 = vadd.f32 %v99, %v101
    %v104 = vadd.f32 %v100, %v102
    %v105 = vld [vmem:[#allocation7] sm:$0xff]
    %v106 = vadd.f32 %v103, %v104
    %v107 = vadd.f32 %v105, %v106
    %108 = vst [vmem:[#allocation7] sm:$0xff] %v107
    // Predicated region
    $region22: #{tpu_custom_call.1} parent=1 // pred_check
      _
    $region23: #{tpu_custom_call.1} parent=1 // pred_check_branch
      %110 = sbr.rel (0) target = $region25
    $region24: #{tpu_custom_call.1} parent=1 // pred_region
      %s112 = ssub.s32 128, 128
      %113 = vsyncadd [#allocation4], %s112
      %s115 = sshll.u32 [#allocation7], 4
      %s116 = int_to_ptr.vmem [resolvable:$true] %s115
      %118 = dma.vmem_to_hbm [thread:$0]  %s116, 128, %s2, [#allocation4]
    $region25: #{tpu_custom_call.1} parent=1 // pred_fallthru
      _
    // Predicated region
    $region26: #{tpu_custom_call.1} parent=1 // pred_check
      _
    $region27: #{tpu_custom_call.1} parent=1 // pred_check_branch
      %120 = sbr.rel (0) target = $region29
    $region28: #{tpu_custom_call.1} parent=1 // pred_region
      %121 = dma.done [#allocation4], 128
    $region29: #{tpu_custom_call.1} parent=1 // pred_fallthru
      _
    %122 = vsyncpa [#allocation3], 1
    %123 = vsyncpa [#allocation6], 1
    %124 = vsyncpa [#allocation4], 1

</llo_original>
